<compile_context>
chip_gen: v5e
topology: v5e:2x2
jax: 0.10.0
libtpu: 0.0.40
codegen_flags: <defaults>
</compile_context>

<pallas_src>
import functools

import jax
import jax.numpy as jnp
from jax.experimental import pallas as pl
from jax.experimental.pallas import tpu as pltpu


def _infonce_kernel(l_ref, u_ref, out_ref, gram_acc, sumsq_l, sumsq_u,
                    *, inv_temp, weight, b_u, b_l):
    k = pl.program_id(0)

    @pl.when(k == 0)
    def _init():
        gram_acc[...] = jnp.zeros_like(gram_acc)
        sumsq_l[...] = jnp.zeros_like(sumsq_l)
        sumsq_u[...] = jnp.zeros_like(sumsq_u)

    l = l_ref[...].astype(jnp.float32)      # (b_l, block_d)
    u = u_ref[...].astype(jnp.float32)      # (b_u, block_d)

    # Unnormalized Gram chunk: u @ l.T (contract the feature axis of both).
    gram_acc[...] += jax.lax.dot_general(
        u, l, dimension_numbers=(((1,), (1,)), ((), ())),
        preferred_element_type=jnp.float32)
    sumsq_l[...] += jnp.sum(l * l, axis=1, keepdims=True)   # (b_l, 1)
    sumsq_u[...] += jnp.sum(u * u, axis=1, keepdims=True)   # (b_u, 1)

    @pl.when(k == pl.num_programs(0) - 1)
    def _finalize():
        eps = 1e-12  # matches F.normalize eps
        inv_norm_u = 1.0 / jnp.maximum(jnp.sqrt(sumsq_u[...]), eps)   # (b_u, 1)
        inv_norm_l = 1.0 / jnp.maximum(jnp.sqrt(sumsq_l[...]), eps)   # (b_l, 1)

        # (b_l, 1) -> (1, b_l) without an explicit transpose: scatter the
        # values onto a diagonal and sublane-reduce.
        rl = jax.lax.broadcasted_iota(jnp.int32, (b_l, b_l), 0)
        cl = jax.lax.broadcasted_iota(jnp.int32, (b_l, b_l), 1)
        inv_norm_l_row = jnp.sum(
            jnp.where(rl == cl, inv_norm_l, 0.0), axis=0, keepdims=True)  # (1, b_l)

        # logits[i, j] = (u_i . l_j) / (||u_i|| * ||l_j||) / temperature
        logits = gram_acc[...] * inv_norm_u * inv_norm_l_row * inv_temp   # (b_u, b_l)

        # cross_entropy(logits, labels=arange(b_u)), reduction='mean'
        ru = jax.lax.broadcasted_iota(jnp.int32, (b_u, b_l), 0)
        cu = jax.lax.broadcasted_iota(jnp.int32, (b_u, b_l), 1)
        diag_mask = ru == cu

        m = jnp.max(logits, axis=1, keepdims=True)                         # (b_u, 1)
        lse = jnp.log(jnp.sum(jnp.exp(logits - m), axis=1, keepdims=True)) + m
        pos = jnp.sum(jnp.where(diag_mask, logits, 0.0), axis=1, keepdims=True)
        per_row = lse - pos                                                # (b_u, 1)
        loss = jnp.sum(per_row, axis=0, keepdims=True) * (weight / b_u)    # (1, 1)
        out_ref[...] = loss


def contrastive_infonce_loss(labeled_features, unlabeled_features,
                             temperature=0.07, weight=1.0,
                             max_block_d=32768):
    """Pallas implementation of Contrastive_InfoNCE_Loss.forward(labeled, unlabeled)."""
    lf = labeled_features.reshape(labeled_features.shape[0], -1).astype(jnp.float32)
    uf = unlabeled_features.reshape(unlabeled_features.shape[0], -1).astype(jnp.float32)
    b_l, d = lf.shape
    b_u, d_u = uf.shape
    assert d == d_u, "labeled / unlabeled flattened feature dims must match"
    assert b_u <= b_l, "labels = arange(B_u) must be valid class indices (B_u <= B_l)"

    # Chunk the feature (reduction) axis; a single big lane-dense block when it fits.
    if d <= max_block_d:
        block_d = d                     # block == full array dim -> single grid step
    else:
        block_d = max_block_d           # multiple of 128 -> lane-dense blocks
        pad = (-d) % block_d
        if pad:
            # Zero padding is exact: zeros contribute nothing to Gram or norms.
            lf = jnp.pad(lf, ((0, 0), (0, pad)))
            uf = jnp.pad(uf, ((0, 0), (0, pad)))
            d = d + pad
    num_k = d // block_d

    kernel = functools.partial(
        _infonce_kernel,
        inv_temp=float(1.0 / temperature),
        weight=float(weight),
        b_u=b_u, b_l=b_l)

    out = pl.pallas_call(
        kernel,
        out_shape=jax.ShapeDtypeStruct((1, 1), jnp.float32),
        grid_spec=pltpu.PrefetchScalarGridSpec(
            num_scalar_prefetch=0,
            grid=(num_k,),
            in_specs=[
                pl.BlockSpec((b_l, block_d), lambda k: (0, k)),
                pl.BlockSpec((b_u, block_d), lambda k: (0, k)),
            ],
            out_specs=pl.BlockSpec((1, 1), lambda k: (0, 0)),
            scratch_shapes=[
                pltpu.VMEM((b_u, b_l), jnp.float32),   # Gram accumulator
                pltpu.VMEM((b_l, 1), jnp.float32),     # sum(l^2) per row
                pltpu.VMEM((b_u, 1), jnp.float32),     # sum(u^2) per row
            ],
        ),
        compiler_params=pltpu.CompilerParams(
            dimension_semantics=("arbitrary",),        # feature axis is a reduction
        ),
    )(lf, uf)
    return out[0, 0]


def _reference(labeled, unlabeled, temperature=0.07, weight=1.0):
    """Pure-JAX reference mirroring the PyTorch forward."""
    lf = labeled.reshape(labeled.shape[0], -1).astype(jnp.float32)
    uf = unlabeled.reshape(unlabeled.shape[0], -1).astype(jnp.float32)
    lf = lf / jnp.maximum(jnp.linalg.norm(lf, axis=1, keepdims=True), 1e-12)
    uf = uf / jnp.maximum(jnp.linalg.norm(uf, axis=1, keepdims=True), 1e-12)
    logits = (uf @ lf.T) / temperature
    b = logits.shape[0]
    logp = jax.nn.log_softmax(logits, axis=1)
    loss = -jnp.mean(logp[jnp.arange(b), jnp.arange(b)])
    return loss * weight


if __name__ == "__main__":
    key = jax.random.PRNGKey(0)
    k1, k2 = jax.random.split(key)

    # Feature maps as the forward implies: (B, C, H, W) flattened to D = C*H*W = 1024.
    B, C, H, W = 4, 4, 16, 16
    labeled = jax.random.normal(k1, (B, C, H, W), dtype=jnp.float32)
    unlabeled = jax.random.normal(k2, (B, C, H, W), dtype=jnp.float32)

    loss = jax.jit(contrastive_infonce_loss)(labeled, unlabeled)
    loss = jax.block_until_ready(loss)

    ref = _reference(labeled, unlabeled)
    assert jnp.allclose(loss, ref, rtol=1e-4, atol=1e-5), (loss, ref)

    print("KERNEL_OK")
</pallas_src>

<mosaic_0001>
module attributes {stable_mosaic.version = 11 : i64} {
  func.func @_infonce_kernel(%arg0: i32, %arg1: memref<4x1024xf32, #tpu.memory_space<vmem>>, %arg2: memref<4x1024xf32, #tpu.memory_space<vmem>>, %arg3: memref<1x1xf32, #tpu.memory_space<vmem>>, %arg4: memref<4x4xf32, #tpu.memory_space<vmem>>, %arg5: memref<4x1xf32, #tpu.memory_space<vmem>>, %arg6: memref<4x1xf32, #tpu.memory_space<vmem>>) attributes {dimension_semantics = [#tpu.dimension_semantics<arbitrary>], iteration_bounds = array<i64: 1>, scalar_prefetch = 0 : i64, scratch_operands = 3 : i64, tpu.core_type = #tpu.core_type<tc>, window_params = [{transform_indices = @transform_0, window_bounds = array<i64: 4, 1024>}, {transform_indices = @transform_1, window_bounds = array<i64: 4, 1024>}, {pipeline_mode = #tpu.pipeline_mode<synchronous>, transform_indices = @transform_2, window_bounds = array<i64: 1, 1>}]} {
    %c0_i32 = arith.constant 0 : i32
    %0 = arith.cmpi eq, %arg0, %c0_i32 : i32
    %1 = arith.extui %0 : i1 to i32
    %c0_i32_0 = arith.constant 0 : i32
    %2 = arith.cmpi ne, %1, %c0_i32_0 : i32
    scf.if %2 {
      %cst_20 = arith.constant 0.000000e+00 : f32
      %24 = vector.broadcast %cst_20 : f32 to vector<4x4xf32>
      %c0_21 = arith.constant 0 : index
      %c0_22 = arith.constant 0 : index
      %25 = vector.load %arg4[%c0_21, %c0_22] : memref<4x4xf32, #tpu.memory_space<vmem>>, vector<4x4xf32>
      tpu.vector_store %arg4[%c0_21, %c0_22], %24 {strides = array<i32>} : memref<4x4xf32, #tpu.memory_space<vmem>>, vector<4x4xf32>,
      %cst_23 = arith.constant 0.000000e+00 : f32
      %26 = vector.broadcast %cst_23 : f32 to vector<4x1xf32>
      %c0_24 = arith.constant 0 : index
      %c0_25 = arith.constant 0 : index
      %27 = vector.load %arg5[%c0_24, %c0_25] : memref<4x1xf32, #tpu.memory_space<vmem>>, vector<4x1xf32>
      tpu.vector_store %arg5[%c0_24, %c0_25], %26 {strides = array<i32>} : memref<4x1xf32, #tpu.memory_space<vmem>>, vector<4x1xf32>,
      %cst_26 = arith.constant 0.000000e+00 : f32
      %28 = vector.broadcast %cst_26 : f32 to vector<4x1xf32>
      %c0_27 = arith.constant 0 : index
      %c0_28 = arith.constant 0 : index
      %29 = vector.load %arg6[%c0_27, %c0_28] : memref<4x1xf32, #tpu.memory_space<vmem>>, vector<4x1xf32>
      tpu.vector_store %arg6[%c0_27, %c0_28], %28 {strides = array<i32>} : memref<4x1xf32, #tpu.memory_space<vmem>>, vector<4x1xf32>,
    } else {
    }
    %c0 = arith.constant 0 : index
    %c0_1 = arith.constant 0 : index
    %3 = vector.load %arg1[%c0, %c0_1] : memref<4x1024xf32, #tpu.memory_space<vmem>>, vector<4x1024xf32>
    %c0_2 = arith.constant 0 : index
    %c0_3 = arith.constant 0 : index
    %4 = vector.load %arg2[%c0_2, %c0_3] : memref<4x1024xf32, #tpu.memory_space<vmem>>, vector<4x1024xf32>
    %c0_4 = arith.constant 0 : index
    %c0_5 = arith.constant 0 : index
    %5 = vector.load %arg4[%c0_4, %c0_5] : memref<4x4xf32, #tpu.memory_space<vmem>>, vector<4x4xf32>
    %cst = arith.constant dense<0.000000e+00> : vector<4x4xf32>
    %6 = tpu.matmul %4, %3, %cst {dimension_numbers = #tpu.dot_dimension_numbers<[1], [1], [0], [0], [0, 0, 1, 0], [], []>} : vector<4x1024xf32>, vector<4x1024xf32>, vector<4x4xf32> -> vector<4x4xf32>
    %7 = arith.addf %5, %6 : vector<4x4xf32>
    %c0_6 = arith.constant 0 : index
    %c0_7 = arith.constant 0 : index
    %8 = vector.load %arg4[%c0_6, %c0_7] : memref<4x4xf32, #tpu.memory_space<vmem>>, vector<4x4xf32>
    tpu.vector_store %arg4[%c0_6, %c0_7], %7 {strides = array<i32>} : memref<4x4xf32, #tpu.memory_space<vmem>>, vector<4x4xf32>,
    %c0_8 = arith.constant 0 : index
    %c0_9 = arith.constant 0 : index
    %9 = vector.load %arg5[%c0_8, %c0_9] : memref<4x1xf32, #tpu.memory_space<vmem>>, vector<4x1xf32>
    %10 = arith.mulf %3, %3 : vector<4x1024xf32>
    %cst_10 = arith.constant dense<0.000000e+00> : vector<4xf32>
    %11 = vector.multi_reduction <add>, %10, %cst_10 [1] : vector<4x1024xf32> to vector<4xf32>
    %12 = vector.shape_cast %11 : vector<4xf32> to vector<4x1xf32>
    %13 = arith.addf %9, %12 : vector<4x1xf32>
    %c0_11 = arith.constant 0 : index
    %c0_12 = arith.constant 0 : index
    %14 = vector.load %arg5[%c0_11, %c0_12] : memref<4x1xf32, #tpu.memory_space<vmem>>, vector<4x1xf32>
    tpu.vector_store %arg5[%c0_11, %c0_12], %13 {strides = array<i32>} : memref<4x1xf32, #tpu.memory_space<vmem>>, vector<4x1xf32>,
    %c0_13 = arith.constant 0 : index
    %c0_14 = arith.constant 0 : index
    %15 = vector.load %arg6[%c0_13, %c0_14] : memref<4x1xf32, #tpu.memory_space<vmem>>, vector<4x1xf32>
    %16 = arith.mulf %4, %4 : vector<4x1024xf32>
    %cst_15 = arith.constant dense<0.000000e+00> : vector<4xf32>
    %17 = vector.multi_reduction <add>, %16, %cst_15 [1] : vector<4x1024xf32> to vector<4xf32>
    %18 = vector.shape_cast %17 : vector<4xf32> to vector<4x1xf32>
    %19 = arith.addf %15, %18 : vector<4x1xf32>
    %c0_16 = arith.constant 0 : index
    %c0_17 = arith.constant 0 : index
    %20 = vector.load %arg6[%c0_16, %c0_17] : memref<4x1xf32, #tpu.memory_space<vmem>>, vector<4x1xf32>
    tpu.vector_store %arg6[%c0_16, %c0_17], %19 {strides = array<i32>} : memref<4x1xf32, #tpu.memory_space<vmem>>, vector<4x1xf32>,
    %c0_i32_18 = arith.constant 0 : i32
    %21 = arith.cmpi eq, %arg0, %c0_i32_18 : i32
    %22 = arith.extui %21 : i1 to i32
    %c0_i32_19 = arith.constant 0 : i32
    %23 = arith.cmpi ne, %22, %c0_i32_19 : i32
    scf.if %23 {
      %c0_20 = arith.constant 0 : index
      %c0_21 = arith.constant 0 : index
      %24 = vector.load %arg6[%c0_20, %c0_21] : memref<4x1xf32, #tpu.memory_space<vmem>>, vector<4x1xf32>
      %25 = math.sqrt %24 : vector<4x1xf32>
      %cst_22 = arith.constant 9.99999996E-13 : f32
      %26 = vector.broadcast %cst_22 : f32 to vector<4x1xf32>
      %27 = arith.maximumf %25, %26 : vector<4x1xf32>
      %cst_23 = arith.constant 1.000000e+00 : f32
      %28 = vector.broadcast %cst_23 : f32 to vector<4x1xf32>
      %29 = arith.divf %28, %27 : vector<4x1xf32>
      %c0_24 = arith.constant 0 : index
      %c0_25 = arith.constant 0 : index
      %30 = vector.load %arg5[%c0_24, %c0_25] : memref<4x1xf32, #tpu.memory_space<vmem>>, vector<4x1xf32>
      %31 = math.sqrt %30 : vector<4x1xf32>
      %cst_26 = arith.constant 9.99999996E-13 : f32
      %32 = vector.broadcast %cst_26 : f32 to vector<4x1xf32>
      %33 = arith.maximumf %31, %32 : vector<4x1xf32>
      %cst_27 = arith.constant 1.000000e+00 : f32
      %34 = vector.broadcast %cst_27 : f32 to vector<4x1xf32>
      %35 = arith.divf %34, %33 : vector<4x1xf32>
      %36 = tpu.iota {dimensions = array<i32: 0>} : vector<4x4xi32>
      %37 = tpu.iota {dimensions = array<i32: 1>} : vector<4x4xi32>
      %38 = arith.cmpi eq, %36, %37 : vector<4x4xi32>
      %cst_28 = arith.constant 0.000000e+00 : f32
      %39 = vector.shape_cast %35 : vector<4x1xf32> to vector<4x1xf32>
      %40 = vector.broadcast %39 : vector<4x1xf32> to vector<4x4xf32>
      %41 = vector.broadcast %cst_28 : f32 to vector<4x4xf32>
      %42 = arith.select %38, %40, %41 : vector<4x4xi1>, vector<4x4xf32>
      %cst_29 = arith.constant dense<0.000000e+00> : vector<4xf32>
      %43 = vector.multi_reduction <add>, %42, %cst_29 [0] : vector<4x4xf32> to vector<4xf32>
      %44 = vector.shape_cast %43 : vector<4xf32> to vector<1x4xf32>
      %c0_30 = arith.constant 0 : index
      %c0_31 = arith.constant 0 : index
      %45 = vector.load %arg4[%c0_30, %c0_31] : memref<4x4xf32, #tpu.memory_space<vmem>>, vector<4x4xf32>
      %46 = vector.broadcast %29 : vector<4x1xf32> to vector<4x4xf32>
      %47 = arith.mulf %45, %46 : vector<4x4xf32>
      %48 = vector.broadcast %44 : vector<1x4xf32> to vector<4x4xf32>
      %49 = arith.mulf %47, %48 : vector<4x4xf32>
      %cst_32 = arith.constant 14.2857141 : f32
      %50 = vector.broadcast %cst_32 : f32 to vector<4x4xf32>
      %51 = arith.mulf %49, %50 : vector<4x4xf32>
      %52 = tpu.iota {dimensions = array<i32: 0>} : vector<4x4xi32>
      %53 = tpu.iota {dimensions = array<i32: 1>} : vector<4x4xi32>
      %54 = arith.cmpi eq, %52, %53 : vector<4x4xi32>
      %cst_33 = arith.constant dense<0xFF800000> : vector<4xf32>
      %55 = vector.multi_reduction <maximumf>, %51, %cst_33 [1] : vector<4x4xf32> to vector<4xf32>
      %56 = vector.shape_cast %55 : vector<4xf32> to vector<4x1xf32>
      %57 = vector.broadcast %56 : vector<4x1xf32> to vector<4x4xf32>
      %58 = arith.subf %51, %57 : vector<4x4xf32>
      %59 = math.exp %58 : vector<4x4xf32>
      %cst_34 = arith.constant dense<0.000000e+00> : vector<4xf32>
      %60 = vector.multi_reduction <add>, %59, %cst_34 [1] : vector<4x4xf32> to vector<4xf32>
      %61 = vector.shape_cast %60 : vector<4xf32> to vector<4x1xf32>
      %62 = math.log %61 : vector<4x1xf32>
      %63 = arith.addf %62, %56 : vector<4x1xf32>
      %cst_35 = arith.constant 0.000000e+00 : f32
      %64 = vector.broadcast %cst_35 : f32 to vector<4x4xf32>
      %65 = arith.select %54, %51, %64 : vector<4x4xi1>, vector<4x4xf32>
      %cst_36 = arith.constant dense<0.000000e+00> : vector<4xf32>
      %66 = vector.multi_reduction <add>, %65, %cst_36 [1] : vector<4x4xf32> to vector<4xf32>
      %67 = vector.shape_cast %66 : vector<4xf32> to vector<4x1xf32>
      %68 = arith.subf %63, %67 : vector<4x1xf32>
      %cst_37 = arith.constant dense<0.000000e+00> : vector<1xf32>
      %69 = vector.multi_reduction <add>, %68, %cst_37 [0] : vector<4x1xf32> to vector<1xf32>
      %70 = vector.shape_cast %69 : vector<1xf32> to vector<1x1xf32>
      %cst_38 = arith.constant 2.500000e-01 : f32
      %71 = vector.broadcast %cst_38 : f32 to vector<1x1xf32>
      %72 = arith.mulf %70, %71 : vector<1x1xf32>
      %c0_39 = arith.constant 0 : index
      %c0_40 = arith.constant 0 : index
      %73 = vector.load %arg3[%c0_39, %c0_40] : memref<1x1xf32, #tpu.memory_space<vmem>>, vector<1x1xf32>
      tpu.vector_store %arg3[%c0_39, %c0_40], %72 {strides = array<i32>} : memref<1x1xf32, #tpu.memory_space<vmem>>, vector<1x1xf32>,
    } else {
    }
    return
  }
  func.func @transform_0(%arg0: i32) -> (i32, i32) {
    %c0_i32 = arith.constant 0 : i32
    %c0_i32_0 = arith.constant 0 : i32
    return %c0_i32, %arg0 : i32, i32
  }
  func.func @transform_1(%arg0: i32) -> (i32, i32) {
    %c0_i32 = arith.constant 0 : i32
    %c0_i32_0 = arith.constant 0 : i32
    return %c0_i32, %arg0 : i32, i32
  }
  func.func @transform_2(%arg0: i32) -> (i32, i32) {
    %c0_i32 = arith.constant 0 : i32
    %c0_i32_0 = arith.constant 0 : i32
    %c0_i32_1 = arith.constant 0 : i32
    return %c0_i32, %c0_i32_0 : i32, i32
  }
}

</mosaic_0001>

<llo_original>
// kernel: contrastive_infonce_loss.1
$region0: #{contrastive_infonce_loss.1}
  #allocation0 [shape = 'u32[]', space=smem, size = 0x4, offset = 0x4, fixed_abs, tag = 'smem constant byte address 0x4 - core index']
  #allocation1 [shape = 'u32[72,128]{1,0:T(1,128)}', space=vmem, size = 0x9000, scoped, tag = 'internal scratch']
  #allocation2 [shape = 'f32[4,4]{1,0:T(4,128)}', space=vmem, size = 0x800, scoped, tag = 'scratch operand']
  #allocation3 [shape = 'f32[4,1]{1,0:T(4,128)}', space=vmem, size = 0x800, scoped, tag = 'scratch operand']
  #allocation4 [shape = 'f32[4,1]{1,0:T(4,128)}', space=vmem, size = 0x800, scoped, tag = 'scratch operand']
  %s0 = inlined_call_operand.vmem [shape: f32[4,1024], index: 0, kind: input, shape index: {}]
  %s1 = inlined_call_operand.vmem [shape: f32[4,1024], index: 1, kind: input, shape index: {}]
  %s2 = inlined_call_operand.hbm [shape: f32[1,1], index: 2, kind: output, shape index: {}]
  %s3 = sld [smem:[#allocation0]]
  $region26: #{contrastive_infonce_loss.1} parent=0
    _
  %s5 = ssub.s32 1, %s3
  %s6 = scalar_select 0, %s5, %s3
  $region1: #{contrastive_infonce_loss.1} parent=0
    #allocation5 [shape = 'u8[512]{0}', space=vmem, size = 0x400, scoped, tag = 'output window, operand 0, single buffered']
    #allocation6 [shape = 's32[1]{0}', space=sflag, size = 0x4, scoped, tag = 'scoped memory for contrastive_infonce_loss.1']
    %7 = vsyncpa [#allocation6], 0
    // Predicated region
    $region2: #{contrastive_infonce_loss.1} parent=1 // pred_check
      _
    $region3: #{contrastive_infonce_loss.1} parent=1 // pred_check_branch
      %9 = sbr.rel (0) target = $region5
    $region4: #{contrastive_infonce_loss.1} parent=1 // pred_region
      _
    $region5: #{contrastive_infonce_loss.1} parent=1 // pred_fallthru
      _
    // Predicated region
    $region6: #{contrastive_infonce_loss.1} parent=1 // pred_check
      _
    $region7: #{contrastive_infonce_loss.1} parent=1 // pred_check_branch
      %11 = sbr.rel (0) target = $region9
    $region8: #{contrastive_infonce_loss.1} parent=1 // pred_region
      _
    $region9: #{contrastive_infonce_loss.1} parent=1 // pred_fallthru
      _
    %p12 = scmp.eq.s32.totalorder 0, 0
    // Predicated region
    $region10: #{contrastive_infonce_loss.1} parent=1 // pred_check
      %p13 = pneg %p12
    $region11: #{contrastive_infonce_loss.1} parent=1 // pred_check_branch
      %15 = sbr.rel (%p13) target = $region13
    $region12: #{contrastive_infonce_loss.1} parent=1 // pred_region
      %vm16 = vcmask 27648
      %17 = vst.msk [vmem:[#allocation2] sm:$0xf] %vm16, 0.0
      %vm18 = vcmask 3072
      %19 = vst.msk [vmem:[#allocation3] sm:$0xf] %vm18, 0.0
      %20 = vst.msk [vmem:[#allocation4] sm:$0xf] %vm18, 0.0
    $region13: #{contrastive_infonce_loss.1} parent=1 // pred_fallthru
      _
    %v21 = vld [vmem:[%s0] sm:$0xff]
    %v22 = vld [vmem:[%s0 + $0x8] sm:$0xff]
    %v23 = vld [vmem:[%s0 + $0x10] sm:$0xff]
    %v24 = vld [vmem:[%s0 + $0x18] sm:$0xff]
    %v25 = vld [vmem:[%s1] sm:$0xff]
    %v26 = vld [vmem:[%s1 + $0x8] sm:$0xff]
    %v27 = vld [vmem:[%s1 + $0x10] sm:$0xff]
    %v28 = vld [vmem:[%s1 + $0x18] sm:$0xff]
    %v29 = vld [vmem:[#allocation2] sm:$0xf]
    %34 = vst [vmem:[#allocation1] ss:$2 sm:$0xff] %v25
    %s35 = scalar_lea.vmem [#allocation1], 16
    %36 = vst [vmem:[%s35] ss:$2 sm:$0xff] %v26
    %s37 = scalar_lea.vmem [#allocation1], 32
    %38 = vst [vmem:[%s37] ss:$2 sm:$0xff] %v27
    %s39 = scalar_lea.vmem [#allocation1], 48
    %40 = vst [vmem:[%s39] ss:$2 sm:$0xff] %v28
    %v41 = vld.sshfl [vmem:[#allocation1] sm:$0xff pattern:$0x75316420]
    %v42 = vld.sshfl [vmem:[#allocation1 + $0x8] sm:$0xff pattern:$0x75316420]
    %v43 = vld.sshfl [vmem:[#allocation1 + $0x10] sm:$0xff pattern:$0x75316420]
    %v44 = vld.sshfl [vmem:[#allocation1 + $0x18] sm:$0xff pattern:$0x75316420]
    %v45 = vld.sshfl [vmem:[#allocation1 + $0x20] sm:$0xff pattern:$0x75316420]
    %v46 = vld.sshfl [vmem:[#allocation1 + $0x28] sm:$0xff pattern:$0x75316420]
    %v47 = vld.sshfl [vmem:[#allocation1 + $0x30] sm:$0xff pattern:$0x75316420]
    %v48 = vld.sshfl [vmem:[#allocation1 + $0x38] sm:$0xff pattern:$0x75316420]
    %61 = vst [vmem:[#allocation1] ss:$2 sm:$0xff] %v21
    %s62 = scalar_lea.vmem [#allocation1], 16
    %63 = vst [vmem:[%s62] ss:$2 sm:$0xff] %v22
    %s64 = scalar_lea.vmem [#allocation1], 32
    %65 = vst [vmem:[%s64] ss:$2 sm:$0xff] %v23
    %s66 = scalar_lea.vmem [#allocation1], 48
    %67 = vst [vmem:[%s66] ss:$2 sm:$0xff] %v24
    %v68 = vld.sshfl [vmem:[#allocation1] sm:$0xff pattern:$0x75316420]
    %v69 = vld.sshfl [vmem:[#allocation1 + $0x8] sm:$0xff pattern:$0x75316420]
    %v70 = vld.sshfl [vmem:[#allocation1 + $0x10] sm:$0xff pattern:$0x75316420]
    %v71 = vld.sshfl [vmem:[#allocation1 + $0x18] sm:$0xff pattern:$0x75316420]
    %v72 = vld.sshfl [vmem:[#allocation1 + $0x20] sm:$0xff pattern:$0x75316420]
    %v73 = vld.sshfl [vmem:[#allocation1 + $0x28] sm:$0xff pattern:$0x75316420]
    %v74 = vld.sshfl [vmem:[#allocation1 + $0x30] sm:$0xff pattern:$0x75316420]
    %v75 = vld.sshfl [vmem:[#allocation1 + $0x38] sm:$0xff pattern:$0x75316420]
    %84 = vmatpush.xpose.msra.mxu0 0.0
    %85 = vmatpush.xpose.msra.mxu0 0.0
    %86 = vmatpush.xpose.msra.mxu0 0.0
    %87 = vmatpush.xpose.msra.mxu0 0.0
    %88 = vmatpush.xpose.msra.mxu0 0.0
    %89 = vmatpush.xpose.msra.mxu0 0.0
    %90 = vmatpush.xpose.msra.mxu0 0.0
    %91 = vmatpush.xpose.msra.mxu0 0.0
    %92 = vmatpush.xpose.msra.mxu0 0.0
    %93 = vmatpush.xpose.msra.mxu0 0.0
    %94 = vmatpush.xpose.msra.mxu0 0.0
    %95 = vmatpush.xpose.msra.mxu0 0.0
    %96 = vmatpush.xpose.msra.mxu0 0.0
    %97 = vmatpush.xpose.msra.mxu0 0.0
    %98 = vmatpush.xpose.msra.mxu0 0.0
    %99 = vmatpush.xpose.msra.mxu0 %v68
    %100 = vmatmul.f32.gmra.mxu0 %v41
    %v101 = vpop.f32.mrf.mxu0
    %v102 = vadd.f32 0.0, %v101
    %103 = vdwg.mxu0
    %104 = vmatpush.xpose.msra.mxu0 0.0
    %105 = vmatpush.xpose.msra.mxu0 0.0
    %106 = vmatpush.xpose.msra.mxu0 0.0
    %107 = vmatpush.xpose.msra.mxu0 0.0
    %108 = vmatpush.xpose.msra.mxu0 0.0
    %109 = vmatpush.xpose.msra.mxu0 0.0
    %110 = vmatpush.xpose.msra.mxu0 0.0
    %111 = vmatpush.xpose.msra.mxu0 0.0
    %112 = vmatpush.xpose.msra.mxu0 0.0
    %113 = vmatpush.xpose.msra.mxu0 0.0
    %114 = vmatpush.xpose.msra.mxu0 0.0
    %115 = vmatpush.xpose.msra.mxu0 0.0
    %116 = vmatpush.xpose.msra.mxu0 0.0
    %117 = vmatpush.xpose.msra.mxu0 0.0
    %118 = vmatpush.xpose.msra.mxu0 0.0
    %119 = vmatpush.xpose.msra.mxu0 %v69
    %120 = vmatmul.f32.gmra.mxu0 %v42
    %v121 = vpop.f32.mrf.mxu0
    %v122 = vadd.f32 %v102, %v121
    %123 = vdwg.mxu0
    %124 = vmatpush.xpose.msra.mxu0 0.0
    %125 = vmatpush.xpose.msra.mxu0 0.0
    %126 = vmatpush.xpose.msra.mxu0 0.0
    %127 = vmatpush.xpose.msra.mxu0 0.0
    %128 = vmatpush.xpose.msra.mxu0 0.0
    %129 = vmatpush.xpose.msra.mxu0 0.0
    %130 = vmatpush.xpose.msra.mxu0 0.0
    %131 = vmatpush.xpose.msra.mxu0 0.0
    %132 = vmatpush.xpose.msra.mxu0 0.0
    %133 = vmatpush.xpose.msra.mxu0 0.0
    %134 = vmatpush.xpose.msra.mxu0 0.0
    %135 = vmatpush.xpose.msra.mxu0 0.0
    %136 = vmatpush.xpose.msra.mxu0 0.0
    %137 = vmatpush.xpose.msra.mxu0 0.0
    %138 = vmatpush.xpose.msra.mxu0 0.0
    %139 = vmatpush.xpose.msra.mxu0 %v70
    %140 = vmatmul.f32.gmra.mxu0 %v43
    %v141 = vpop.f32.mrf.mxu0
    %v142 = vadd.f32 %v122, %v141
    %143 = vdwg.mxu0
    %144 = vmatpush.xpose.msra.mxu0 0.0
    %145 = vmatpush.xpose.msra.mxu0 0.0
    %146 = vmatpush.xpose.msra.mxu0 0.0
    %147 = vmatpush.xpose.msra.mxu0 0.0
    %148 = vmatpush.xpose.msra.mxu0 0.0
    %149 = vmatpush.xpose.msra.mxu0 0.0
    %150 = vmatpush.xpose.msra.mxu0 0.0
    %151 = vmatpush.xpose.msra.mxu0 0.0
    %152 = vmatpush.xpose.msra.mxu0 0.0
    %153 = vmatpush.xpose.msra.mxu0 0.0
    %154 = vmatpush.xpose.msra.mxu0 0.0
    %155 = vmatpush.xpose.msra.mxu0 0.0
    %156 = vmatpush.xpose.msra.mxu0 0.0
    %157 = vmatpush.xpose.msra.mxu0 0.0
    %158 = vmatpush.xpose.msra.mxu0 0.0
    %159 = vmatpush.xpose.msra.mxu0 %v71
    %160 = vmatmul.f32.gmra.mxu0 %v44
    %v161 = vpop.f32.mrf.mxu0
    %v162 = vadd.f32 %v142, %v161
    %163 = vdwg.mxu0
    %164 = vmatpush.xpose.msra.mxu0 0.0
    %165 = vmatpush.xpose.msra.mxu0 0.0
    %166 = vmatpush.xpose.msra.mxu0 0.0
    %167 = vmatpush.xpose.msra.mxu0 0.0
    %168 = vmatpush.xpose.msra.mxu0 0.0
    %169 = vmatpush.xpose.msra.mxu0 0.0
    %170 = vmatpush.xpose.msra.mxu0 0.0
    %171 = vmatpush.xpose.msra.mxu0 0.0
    %172 = vmatpush.xpose.msra.mxu0 0.0
    %173 = vmatpush.xpose.msra.mxu0 0.0
    %174 = vmatpush.xpose.msra.mxu0 0.0
    %175 = vmatpush.xpose.msra.mxu0 0.0
    %176 = vmatpush.xpose.msra.mxu0 0.0
    %177 = vmatpush.xpose.msra.mxu0 0.0
    %178 = vmatpush.xpose.msra.mxu0 0.0
    %179 = vmatpush.xpose.msra.mxu0 %v72
    %180 = vmatmul.f32.gmra.mxu0 %v45
    %v181 = vpop.f32.mrf.mxu0
    %v182 = vadd.f32 %v162, %v181
    %183 = vdwg.mxu0
    %184 = vmatpush.xpose.msra.mxu0 0.0
    %185 = vmatpush.xpose.msra.mxu0 0.0
    %186 = vmatpush.xpose.msra.mxu0 0.0
    %187 = vmatpush.xpose.msra.mxu0 0.0
    %188 = vmatpush.xpose.msra.mxu0 0.0
    %189 = vmatpush.xpose.msra.mxu0 0.0
    %190 = vmatpush.xpose.msra.mxu0 0.0
    %191 = vmatpush.xpose.msra.mxu0 0.0
    %192 = vmatpush.xpose.msra.mxu0 0.0
    %193 = vmatpush.xpose.msra.mxu0 0.0
    %194 = vmatpush.xpose.msra.mxu0 0.0
    %195 = vmatpush.xpose.msra.mxu0 0.0
    %196 = vmatpush.xpose.msra.mxu0 0.0
    %197 = vmatpush.xpose.msra.mxu0 0.0
    %198 = vmatpush.xpose.msra.mxu0 0.0
    %199 = vmatpush.xpose.msra.mxu0 %v73
    %200 = vmatmul.f32.gmra.mxu0 %v46
    %v201 = vpop.f32.mrf.mxu0
    %v202 = vadd.f32 %v182, %v201
    %203 = vdwg.mxu0
    %204 = vmatpush.xpose.msra.mxu0 0.0
    %205 = vmatpush.xpose.msra.mxu0 0.0
    %206 = vmatpush.xpose.msra.mxu0 0.0
    %207 = vmatpush.xpose.msra.mxu0 0.0
    %208 = vmatpush.xpose.msra.mxu0 0.0
    %209 = vmatpush.xpose.msra.mxu0 0.0
    %210 = vmatpush.xpose.msra.mxu0 0.0
    %211 = vmatpush.xpose.msra.mxu0 0.0
    %212 = vmatpush.xpose.msra.mxu0 0.0
    %213 = vmatpush.xpose.msra.mxu0 0.0
    %214 = vmatpush.xpose.msra.mxu0 0.0
    %215 = vmatpush.xpose.msra.mxu0 0.0
    %216 = vmatpush.xpose.msra.mxu0 0.0
    %217 = vmatpush.xpose.msra.mxu0 0.0
    %218 = vmatpush.xpose.msra.mxu0 0.0
    %219 = vmatpush.xpose.msra.mxu0 %v74
    %220 = vmatmul.f32.gmra.mxu0 %v47
    %v221 = vpop.f32.mrf.mxu0
    %v222 = vadd.f32 %v202, %v221
    %223 = vdwg.mxu0
    %224 = vmatpush.xpose.msra.mxu0 0.0
    %225 = vmatpush.xpose.msra.mxu0 0.0
    %226 = vmatpush.xpose.msra.mxu0 0.0
    %227 = vmatpush.xpose.msra.mxu0 0.0
    %228 = vmatpush.xpose.msra.mxu0 0.0
    %229 = vmatpush.xpose.msra.mxu0 0.0
    %230 = vmatpush.xpose.msra.mxu0 0.0
    %231 = vmatpush.xpose.msra.mxu0 0.0
    %232 = vmatpush.xpose.msra.mxu0 0.0
    %233 = vmatpush.xpose.msra.mxu0 0.0
    %234 = vmatpush.xpose.msra.mxu0 0.0
    %235 = vmatpush.xpose.msra.mxu0 0.0
    %236 = vmatpush.xpose.msra.mxu0 0.0
    %237 = vmatpush.xpose.msra.mxu0 0.0
    %238 = vmatpush.xpose.msra.mxu0 0.0
    %239 = vmatpush.xpose.msra.mxu0 %v75
    %240 = vmatmul.f32.gmra.mxu0 %v48
    %v241 = vpop.f32.mrf.mxu0
    %v242 = vadd.f32 %v222, %v241
    %243 = vdwg.mxu0
    %v244 = vadd.f32 %v29, %v242
    %vm245 = vcmask 27648
    %246 = vst.msk [vmem:[#allocation2] sm:$0xf] %vm245, %v244
    %v247 = vld [vmem:[#allocation3] sm:$0xf]
    %v248 = vmul.f32 %v21, %v21
    %v249 = vmul.f32 %v22, %v22
    %v250 = vmul.f32 %v23, %v23
    %v251 = vmul.f32 %v24, %v24
    %256 = vst [vmem:[#allocation1] ss:$2 sm:$0xff] %v248
    %s257 = scalar_lea.vmem [#allocation1], 16
    %258 = vst [vmem:[%s257] ss:$2 sm:$0xff] %v249
    %s259 = scalar_lea.vmem [#allocation1], 32
    %260 = vst [vmem:[%s259] ss:$2 sm:$0xff] %v250
    %s261 = scalar_lea.vmem [#allocation1], 48
    %262 = vst [vmem:[%s261] ss:$2 sm:$0xff] %v251
    %v263 = vld.sshfl [vmem:[#allocation1] sm:$0xff pattern:$0x75316420]
    %v264 = vld.sshfl [vmem:[#allocation1 + $0x8] sm:$0xff pattern:$0x75316420]
    %v265 = vld.sshfl [vmem:[#allocation1 + $0x10] sm:$0xff pattern:$0x75316420]
    %v266 = vld.sshfl [vmem:[#allocation1 + $0x18] sm:$0xff pattern:$0x75316420]
    %v267 = vld.sshfl [vmem:[#allocation1 + $0x20] sm:$0xff pattern:$0x75316420]
    %v268 = vld.sshfl [vmem:[#allocation1 + $0x28] sm:$0xff pattern:$0x75316420]
    %v269 = vld.sshfl [vmem:[#allocation1 + $0x30] sm:$0xff pattern:$0x75316420]
    %v270 = vld.sshfl [vmem:[#allocation1 + $0x38] sm:$0xff pattern:$0x75316420]
    %vm279 = vcmask 1043456
    %v280 = vsel %vm279, %v263, 0.0
    %v281 = vsel %vm279, %v264, 0.0
    %v282 = vadd.f32 %v280, %v281
    %v283 = vsel %vm279, %v265, 0.0
    %v284 = vadd.f32 %v282, %v283
    %v285 = vsel %vm279, %v266, 0.0
    %v286 = vadd.f32 %v284, %v285
    %v287 = vsel %vm279, %v267, 0.0
    %v288 = vadd.f32 %v286, %v287
    %v289 = vsel %vm279, %v268, 0.0
    %v290 = vadd.f32 %v288, %v289
    %v291 = vsel %vm279, %v269, 0.0
    %v292 = vadd.f32 %v290, %v291
    %v293 = vsel %vm279, %v270, 0.0
    %v294 = vadd.f32 %v292, %v293
    %295 = vadd.xlane.f32.xlu0 %v294
    %v296 = vpop.xlane.xlu0 %295
    %v297 = vadd.f32 %v247, %v296
    %vm298 = vcmask 3072
    %299 = vst.msk [vmem:[#allocation3] sm:$0xf] %vm298, %v297
    %v300 = vld [vmem:[#allocation4] sm:$0xf]
    %v301 = vmul.f32 %v25, %v25
    %v302 = vmul.f32 %v26, %v26
    %v303 = vmul.f32 %v27, %v27
    %v304 = vmul.f32 %v28, %v28
    %309 = vst [vmem:[#allocation1] ss:$2 sm:$0xff] %v301
    %s310 = scalar_lea.vmem [#allocation1], 16
    %311 = vst [vmem:[%s310] ss:$2 sm:$0xff] %v302
    %s312 = scalar_lea.vmem [#allocation1], 32
    %313 = vst [vmem:[%s312] ss:$2 sm:$0xff] %v303
    %s314 = scalar_lea.vmem [#allocation1], 48
    %315 = vst [vmem:[%s314] ss:$2 sm:$0xff] %v304
    %v316 = vld.sshfl [vmem:[#allocation1] sm:$0xff pattern:$0x75316420]
    %v317 = vld.sshfl [vmem:[#allocation1 + $0x8] sm:$0xff pattern:$0x75316420]
    %v318 = vld.sshfl [vmem:[#allocation1 + $0x10] sm:$0xff pattern:$0x75316420]
    %v319 = vld.sshfl [vmem:[#allocation1 + $0x18] sm:$0xff pattern:$0x75316420]
    %v320 = vld.sshfl [vmem:[#allocation1 + $0x20] sm:$0xff pattern:$0x75316420]
    %v321 = vld.sshfl [vmem:[#allocation1 + $0x28] sm:$0xff pattern:$0x75316420]
    %v322 = vld.sshfl [vmem:[#allocation1 + $0x30] sm:$0xff pattern:$0x75316420]
    %v323 = vld.sshfl [vmem:[#allocation1 + $0x38] sm:$0xff pattern:$0x75316420]
    %v332 = vsel %vm279, %v316, 0.0
    %v333 = vsel %vm279, %v317, 0.0
    %v334 = vadd.f32 %v332, %v333
    %v335 = vsel %vm279, %v318, 0.0
    %v336 = vadd.f32 %v334, %v335
    %v337 = vsel %vm279, %v319, 0.0
    %v338 = vadd.f32 %v336, %v337
    %v339 = vsel %vm279, %v320, 0.0
    %v340 = vadd.f32 %v338, %v339
    %v341 = vsel %vm279, %v321, 0.0
    %v342 = vadd.f32 %v340, %v341
    %v343 = vsel %vm279, %v322, 0.0
    %v344 = vadd.f32 %v342, %v343
    %v345 = vsel %vm279, %v323, 0.0
    %v346 = vadd.f32 %v344, %v345
    %347 = vadd.xlane.f32.xlu0 %v346
    %v348 = vpop.xlane.xlu0 %347
    %v349 = vadd.f32 %v300, %v348
    %350 = vst.msk [vmem:[#allocation4] sm:$0xf] %vm298, %v349
    // Predicated region
    $region14: #{contrastive_infonce_loss.1} parent=1 // pred_check
      %p351 = pneg %p12
    $region15: #{contrastive_infonce_loss.1} parent=1 // pred_check_branch
      %353 = sbr.rel (%p351) target = $region17
    $region16: #{contrastive_infonce_loss.1} parent=1 // pred_region
      %v354 = vld [vmem:[#allocation4] sm:$0xf]
      %v355 = vrsqrt.pop %v354
      %v356 = vmul.f32 %v355, %v354
      %v357 = vmul.f32 %v356, %v355
      %v358 = vmul.f32 0.5, %v357
      %v359 = vsub.f32 1.5, %v358
      %v360 = vmul.f32 %v355, %v359
      %v361 = vmul.f32 %v354, %v360
      %vm362 = vcmp.eq.f32.partialorder %v354, inf
      %v363 = vsel %vm362, %v354, %v361
      %vm364 = vcmp.eq.f32.partialorder %v354, 0.0
      %v365 = vand.u32 %v354, 2147483648
      %v366 = vsel %vm364, %v365, %v363
      %v367 = vmax.f32 %v366, 1e-12
      %v368 = vrcp.pop %v367
      %v369 = vmul.f32 %v367, %v368
      %v370 = vsub.f32 1.0, %v369
      %v371 = vmul.f32 %v368, %v370
      %v372 = vadd.f32 %v368, %v371
      %vm373 = vweird.f32 %v367
      %vm374 = vweird.f32 %v368
      %vm375 = vmor %vm373, %vm374
      %v376 = vsel %vm375, %v368, %v372
      %v377 = vand.u32 2147483647, %v367
      %vm378 = vcmp.eq.f32.partialorder %v377, 8.507059e+37
      %v379 = vand.u32 %v367, 2147483648
      %v380 = vor.u32 1.1754944e-38, %v379
      %v381 = vsel %vm378, %v380, %v376
      %v382 = vmul.f32 1.0, %v381
      %v383 = vld [vmem:[#allocation3] sm:$0xf]
      %v384 = vrsqrt.pop %v383
      %v385 = vmul.f32 %v384, %v383
      %v386 = vmul.f32 %v385, %v384
      %v387 = vmul.f32 0.5, %v386
      %v388 = vsub.f32 1.5, %v387
      %v389 = vmul.f32 %v384, %v388
      %v390 = vmul.f32 %v383, %v389
      %vm391 = vcmp.eq.f32.partialorder %v383, inf
      %v392 = vsel %vm391, %v383, %v390
      %vm393 = vcmp.eq.f32.partialorder %v383, 0.0
      %v394 = vand.u32 %v383, 2147483648
      %v395 = vsel %vm393, %v394, %v392
      %v396 = vmax.f32 %v395, 1e-12
      %v397 = vrcp.pop %v396
      %v398 = vmul.f32 %v396, %v397
      %v399 = vsub.f32 1.0, %v398
      %v400 = vmul.f32 %v397, %v399
      %v401 = vadd.f32 %v397, %v400
      %vm402 = vweird.f32 %v396
      %vm403 = vweird.f32 %v397
      %vm404 = vmor %vm402, %vm403
      %v405 = vsel %vm404, %v397, %v401
      %v406 = vand.u32 2147483647, %v396
      %vm407 = vcmp.eq.f32.partialorder %v406, 8.507059e+37
      %v408 = vand.u32 %v396, 2147483648
      %v409 = vor.u32 1.1754944e-38, %v408
      %v410 = vsel %vm407, %v409, %v405
      %v411 = vmul.f32 1.0, %v410
      %v412 = vlaneseq
      %v413 = vshrl.u32 %v412, 7
      %v414 = vlaneseq
      %v415 = vand.u32 %v414, 127
      %vm416 = vcmp.eq.s32.totalorder %v413, %v415
      %418 = vset.pattern.permute.xlu0 0
      %419 = vperm.xlu0 %418, %v411
      %v420 = vpop.permute.xlu0 %419
      %v422 = vsel %vm416, %v420, 0.0
      %v423 = vsel %vm245, %v422, 0.0
      %v424 = vrot.slane %v423, 4
      %v425 = vadd.f32 %v423, %v424
      %v426 = vrot.slane %v425, 2
      %v427 = vadd.f32 %v425, %v426
      %v428 = vrot.slane %v427, 1
      %v429 = vadd.f32 %v427, %v428
      %v430 = vld [vmem:[#allocation2] sm:$0xf]
      %432 = vset.pattern.permute.xlu0 0
      %433 = vperm.xlu0 %432, %v382
      %v434 = vpop.permute.xlu0 %433
      %v436 = vmul.f32 %v430, %v434
      %v437 = vmul.f32 %v436, %v429
      %v438 = vmul.f32 %v437, 14.285714
      %v439 = vsel %vm245, %v438, -inf
      %440 = vmax.xlane.f32.xlu0 %v439
      %v441 = vpop.xlane.xlu0 %440
      %v442 = vsub.f32 %v438, %v441
      %v443 = vmul.f32 %v442, 1.442695
      %v444 = vpow.pop %v443
      %v445 = vsel %vm245, %v444, 0.0
      %446 = vadd.xlane.f32.xlu0 %v445
      %v447 = vpop.xlane.xlu0 %446
      %v448 = vlog2.pop %v447
      %v449 = vmul.f32 %v448, 0.6931472
      %v450 = vadd.f32 %v449, %v441
      %v451 = vsel %vm416, %v438, 0.0
      %v452 = vsel %vm245, %v451, 0.0
      %453 = vadd.xlane.f32.xlu0 %v452
      %v454 = vpop.xlane.xlu0 %453
      %v455 = vsub.f32 %v450, %v454
      %v456 = vsel %vm279, %v455, 0.0
      %v457 = vrot.slane %v456, 4
      %v458 = vadd.f32 %v456, %v457
      %v459 = vrot.slane %v458, 2
      %v460 = vadd.f32 %v458, %v459
      %v461 = vrot.slane %v460, 1
      %v462 = vadd.f32 %v460, %v461
      %v463 = vmul.f32 %v462, 0.25
      %vm464 = vcmask 0
      %465 = vst.msk [vmem:[#allocation5] sm:$0x1] %vm464, %v463
    $region17: #{contrastive_infonce_loss.1} parent=1 // pred_fallthru
      _
    // Predicated region
    $region18: #{contrastive_infonce_loss.1} parent=1 // pred_check
      _
    $region19: #{contrastive_infonce_loss.1} parent=1 // pred_check_branch
      %467 = sbr.rel (0) target = $region21
    $region20: #{contrastive_infonce_loss.1} parent=1 // pred_region
      %469 = vsyncadd [#allocation6], 0
      %s471 = sshll.u32 [#allocation5], 4
      %s472 = int_to_ptr.vmem [resolvable:$true] %s471
      %s473 = sshll.u32 %s2, 4
      %s474 = int_to_ptr.hbm [resolvable:$true] %s473
      %476 = dma.vmem_to_hbm [thread:$0]  %s472, 16, %s474, [#allocation6]
    $region21: #{contrastive_infonce_loss.1} parent=1 // pred_fallthru
      _
    // Predicated region
    $region22: #{contrastive_infonce_loss.1} parent=1 // pred_check
      _
    $region23: #{contrastive_infonce_loss.1} parent=1 // pred_check_branch
      %478 = sbr.rel (0) target = $region25
    $region24: #{contrastive_infonce_loss.1} parent=1 // pred_region
      %480 = dma.done [#allocation6], 16
    $region25: #{contrastive_infonce_loss.1} parent=1 // pred_fallthru
      _
    %481 = vsyncpa [#allocation6], 1

</llo_original>
